<compile_context>
chip_gen: v7x
topology: tpu7x:2x2x1
jax: 0.10.0
libtpu: 0.0.40
codegen_flags: <defaults>
</compile_context>

<pallas_src>
import functools

import jax
import jax.numpy as jnp
from jax.experimental import pallas as pl
from jax.experimental.pallas import tpu as pltpu

LN_EPS = 1e-5  # nn.LayerNorm default


@functools.lru_cache(maxsize=1)
def _vmem_capacity_bytes():
    """Per-core VMEM capacity; conservative fallback = v7x's 64 MiB/TC."""
    try:
        cap = int(pltpu.get_tpu_info().vmem_capacity_bytes)
        if cap > 0:
            return cap
    except Exception:
        pass
    return 64 * 1024 * 1024


def _vmem_budget_and_limit():
    cap = _vmem_capacity_bytes()
    # Working-set budget for the tile picker (double-buffered I/O + f32 temps),
    # and the scoped limit handed to Mosaic (leave headroom for internal scratch).
    budget = int(0.45 * cap)
    limit = min(int(0.85 * cap), cap - 8 * 1024 * 1024)
    return budget, limit


def _layernorm_kernel(x_ref, g_ref, b_ref, o_ref):
    # x_ref: (tile, H) block of tokens; g_ref/b_ref: (1, H) broadcast params.
    x = x_ref[...].astype(jnp.float32)
    mean = jnp.mean(x, axis=-1, keepdims=True)
    xc = x - mean
    # Two-pass variance: robust to large per-row means (no E[x^2]-mean^2
    # cancellation); the extra sweep is hidden -- kernel is HBM-bound.
    var = jnp.mean(xc * xc, axis=-1, keepdims=True)
    inv = jax.lax.rsqrt(var + LN_EPS)
    g = g_ref[...].astype(jnp.float32)
    b = b_ref[...].astype(jnp.float32)
    o_ref[...] = (xc * inv * g + b).astype(o_ref.dtype)


def _pick_row_tile(n_tokens, hidden, in_bytes, requested, vmem_budget):
    """Largest token-row tile that fits the VMEM budget (HBM-roofline sized)."""
    # Per-row cost: double-buffered input + double-buffered output (input dtype)
    # plus ~4 live tile-sized f32 temporaries inside the kernel body.
    per_row = hidden * (4 * in_bytes + 4 * 4)
    cap = max(8, vmem_budget // per_row)
    # bf16/fp16 pack 16 sublanes per vreg; f32 packs 8.
    pack = 16 if in_bytes == 2 else 8
    n_rounded = -(-int(n_tokens) // pack) * pack  # no point exceeding the data
    tile = min(int(requested), int(cap), n_rounded)
    tile = max(pack, (tile // pack) * pack)
    return tile


@functools.partial(jax.jit, static_argnames=("seq_len", "hidden", "row_tile"))
def gpt2_output_layer(hidden_states, gamma, beta, *, seq_len, hidden, row_tile=1024):
    # Flatten all leading dims into a token axis (tokens-major, hidden on lanes).
    x2d = hidden_states.reshape(-1, hidden)
    n_tokens = x2d.shape[0]
    in_bytes = jnp.dtype(hidden_states.dtype).itemsize

    vmem_budget, vmem_limit = _vmem_budget_and_limit()
    tile = _pick_row_tile(n_tokens, hidden, in_bytes, row_tile, vmem_budget)

    g2d = gamma.reshape(1, hidden)
    b2d = beta.reshape(1, hidden)

    # No padding: the last grid step is a partial block.  Rows are independent
    # (per-row LayerNorm), so any garbage read into the out-of-bounds rows of
    # the final input block is confined to those rows, and their writes are
    # masked by Pallas.
    grid = (pl.cdiv(n_tokens, tile),)

    out2d = pl.pallas_call(
        _layernorm_kernel,
        out_shape=jax.ShapeDtypeStruct((n_tokens, hidden), hidden_states.dtype),
        grid_spec=pltpu.PrefetchScalarGridSpec(
            num_scalar_prefetch=0,
            grid=grid,
            in_specs=[
                pl.BlockSpec((tile, hidden), lambda i: (i, 0)),
                # gamma/beta: constant index_map -> resident across the grid.
                pl.BlockSpec((1, hidden), lambda i: (0, 0)),
                pl.BlockSpec((1, hidden), lambda i: (0, 0)),
            ],
            out_specs=pl.BlockSpec((tile, hidden), lambda i: (i, 0)),
        ),
        compiler_params=pltpu.CompilerParams(
            # Token axis is embarrassingly parallel -> megacore-shard on v7x's 2 TCs.
            dimension_semantics=("parallel",),
            vmem_limit_bytes=vmem_limit,
        ),
    )(x2d, g2d, b2d)

    # self.output_shape = (-1, 512, 4096) in the original; here (-1, seq_len, hidden).
    return out2d.reshape(-1, seq_len, hidden)


def _reference(hidden_states, gamma, beta, seq_len, hidden):
    x = hidden_states.astype(jnp.float32)
    mean = jnp.mean(x, axis=-1, keepdims=True)
    var = jnp.mean((x - mean) ** 2, axis=-1, keepdims=True)
    y = (x - mean) * jax.lax.rsqrt(var + LN_EPS) * gamma + beta
    return y.astype(hidden_states.dtype).reshape(-1, seq_len, hidden)


if __name__ == "__main__":
    key = jax.random.PRNGKey(0)
    k_x, k_g, k_b, k_x2 = jax.random.split(key, 4)

    # Case 1: small shapes consistent with the module's (batch, seq, hidden) contract.
    BATCH, SEQ, HIDDEN = 2, 8, 32
    hidden_states = jax.random.normal(k_x, (BATCH, SEQ, HIDDEN), dtype=jnp.float32)
    gamma = 1.0 + 0.01 * jax.random.normal(k_g, (HIDDEN,), dtype=jnp.float32)
    beta = 0.01 * jax.random.normal(k_b, (HIDDEN,), dtype=jnp.float32)

    out = gpt2_output_layer(hidden_states, gamma, beta, seq_len=SEQ, hidden=HIDDEN)
    out = jax.block_until_ready(out)
    ref = _reference(hidden_states, gamma, beta, SEQ, HIDDEN)
    assert out.shape == (BATCH, SEQ, HIDDEN), out.shape
    assert jnp.allclose(out, ref, atol=1e-5, rtol=1e-5), "mismatch vs reference (case 1)"

    # Case 2: token count not divisible by the tile -> exercises the partial
    # final block (15 tokens, tile 8 -> 2 grid steps, last one ragged).
    B2, S2 = 3, 5
    hs2 = jax.random.normal(k_x2, (B2, S2, HIDDEN), dtype=jnp.float32)
    out2 = gpt2_output_layer(hs2, gamma, beta, seq_len=S2, hidden=HIDDEN, row_tile=8)
    out2 = jax.block_until_ready(out2)
    ref2 = _reference(hs2, gamma, beta, S2, HIDDEN)
    assert out2.shape == (B2, S2, HIDDEN), out2.shape
    assert jnp.allclose(out2, ref2, atol=1e-5, rtol=1e-5), "mismatch vs reference (case 2)"

    # Case 3: shifted-mean inputs (GPT final-hidden-state-like) to exercise the
    # two-pass variance accuracy, plus an offset scale.
    hs3 = 50.0 + 3.0 * jax.random.normal(k_x, (BATCH, SEQ, HIDDEN), dtype=jnp.float32)
    out3 = gpt2_output_layer(hs3, gamma, beta, seq_len=SEQ, hidden=HIDDEN)
    out3 = jax.block_until_ready(out3)
    ref3 = _reference(hs3, gamma, beta, SEQ, HIDDEN)
    assert jnp.allclose(out3, ref3, atol=1e-4, rtol=1e-4), "mismatch vs reference (case 3)"

    print("KERNEL_OK")
</pallas_src>

<mosaic_0001>
module attributes {stable_mosaic.version = 11 : i64} {
  func.func @_layernorm_kernel(%arg0: i32, %arg1: memref<16x32xf32, #tpu.memory_space<vmem>>, %arg2: memref<1x32xf32, #tpu.memory_space<vmem>>, %arg3: memref<1x32xf32, #tpu.memory_space<vmem>>, %arg4: memref<16x32xf32, #tpu.memory_space<vmem>>) attributes {dimension_semantics = [#tpu.dimension_semantics<parallel>], iteration_bounds = array<i64: 1>, scalar_prefetch = 0 : i64, scratch_operands = 0 : i64, tpu.core_type = #tpu.core_type<tc>, window_params = [{transform_indices = @transform_0, window_bounds = array<i64: 16, 32>}, {pipeline_mode = #tpu.pipeline_mode<synchronous>, transform_indices = @transform_1, window_bounds = array<i64: 1, 32>}, {pipeline_mode = #tpu.pipeline_mode<synchronous>, transform_indices = @transform_2, window_bounds = array<i64: 1, 32>}, {transform_indices = @transform_3, window_bounds = array<i64: 16, 32>}]} {
    %c0 = arith.constant 0 : index
    %c0_0 = arith.constant 0 : index
    %0 = vector.load %arg1[%c0, %c0_0] : memref<16x32xf32, #tpu.memory_space<vmem>>, vector<16x32xf32>
    %cst = arith.constant dense<0.000000e+00> : vector<16xf32>
    %1 = vector.multi_reduction <add>, %0, %cst [1] : vector<16x32xf32> to vector<16xf32>
    %2 = vector.shape_cast %1 : vector<16xf32> to vector<16x1xf32>
    %cst_1 = arith.constant 3.200000e+01 : f32
    %3 = vector.broadcast %cst_1 : f32 to vector<16x1xf32>
    %4 = arith.divf %2, %3 : vector<16x1xf32>
    %5 = vector.broadcast %4 : vector<16x1xf32> to vector<16x32xf32>
    %6 = arith.subf %0, %5 : vector<16x32xf32>
    %7 = arith.mulf %6, %6 : vector<16x32xf32>
    %cst_2 = arith.constant dense<0.000000e+00> : vector<16xf32>
    %8 = vector.multi_reduction <add>, %7, %cst_2 [1] : vector<16x32xf32> to vector<16xf32>
    %9 = vector.shape_cast %8 : vector<16xf32> to vector<16x1xf32>
    %cst_3 = arith.constant 3.200000e+01 : f32
    %10 = vector.broadcast %cst_3 : f32 to vector<16x1xf32>
    %11 = arith.divf %9, %10 : vector<16x1xf32>
    %cst_4 = arith.constant 9.99999974E-6 : f32
    %12 = vector.broadcast %cst_4 : f32 to vector<16x1xf32>
    %13 = arith.addf %11, %12 : vector<16x1xf32>
    %14 = math.rsqrt %13 : vector<16x1xf32>
    %c0_5 = arith.constant 0 : index
    %c0_6 = arith.constant 0 : index
    %15 = vector.load %arg2[%c0_5, %c0_6] : memref<1x32xf32, #tpu.memory_space<vmem>>, vector<1x32xf32>
    %c0_7 = arith.constant 0 : index
    %c0_8 = arith.constant 0 : index
    %16 = vector.load %arg3[%c0_7, %c0_8] : memref<1x32xf32, #tpu.memory_space<vmem>>, vector<1x32xf32>
    %17 = vector.broadcast %14 : vector<16x1xf32> to vector<16x32xf32>
    %18 = arith.mulf %6, %17 : vector<16x32xf32>
    %19 = vector.broadcast %15 : vector<1x32xf32> to vector<16x32xf32>
    %20 = arith.mulf %18, %19 : vector<16x32xf32>
    %21 = vector.broadcast %16 : vector<1x32xf32> to vector<16x32xf32>
    %22 = arith.addf %20, %21 : vector<16x32xf32>
    %c0_9 = arith.constant 0 : index
    %c0_10 = arith.constant 0 : index
    %23 = vector.load %arg4[%c0_9, %c0_10] : memref<16x32xf32, #tpu.memory_space<vmem>>, vector<16x32xf32>
    tpu.vector_store %arg4[%c0_9, %c0_10], %22 {strides = array<i32>} : memref<16x32xf32, #tpu.memory_space<vmem>>, vector<16x32xf32>,
    return
  }
  func.func @transform_0(%arg0: i32) -> (i32, i32) {
    %c0_i32 = arith.constant 0 : i32
    %c0_i32_0 = arith.constant 0 : i32
    return %arg0, %c0_i32 : i32, i32
  }
  func.func @transform_1(%arg0: i32) -> (i32, i32) {
    %c0_i32 = arith.constant 0 : i32
    %c0_i32_0 = arith.constant 0 : i32
    %c0_i32_1 = arith.constant 0 : i32
    return %c0_i32, %c0_i32_0 : i32, i32
  }
  func.func @transform_2(%arg0: i32) -> (i32, i32) {
    %c0_i32 = arith.constant 0 : i32
    %c0_i32_0 = arith.constant 0 : i32
    %c0_i32_1 = arith.constant 0 : i32
    return %c0_i32, %c0_i32_0 : i32, i32
  }
  func.func @transform_3(%arg0: i32) -> (i32, i32) {
    %c0_i32 = arith.constant 0 : i32
    %c0_i32_0 = arith.constant 0 : i32
    return %arg0, %c0_i32 : i32, i32
  }
}

</mosaic_0001>

<llo_original>
// kernel: gpt2_output_layer.1
$region0: #{gpt2_output_layer.1}
  #allocation0 [shape = 'u32[]', space=smem, size = 0x4, offset = 0x4, fixed_abs, tag = 'smem constant byte address 0x4 - core index']
  #allocation1 [shape = 'u32[144,128]{1,0:T(1,128)}', space=vmem, size = 0x12000, scoped, tag = 'internal scratch']
  %s0 = inlined_call_operand.hbm [shape: f32[16,32], index: 0, kind: input, shape index: {}]
  %s1 = inlined_call_operand.vmem [shape: f32[1,32], index: 1, kind: input, shape index: {}]
  %s2 = inlined_call_operand.vmem [shape: f32[1,32], index: 2, kind: input, shape index: {}]
  %s3 = inlined_call_operand.hbm [shape: f32[16,32], index: 3, kind: output, shape index: {}]
  %s4 = sld [smem:[#allocation0]]
  $region26: #{gpt2_output_layer.1} parent=0
    _
  %s6 = ssub.s32 1, %s4
  %s7 = scalar_select 0, %s6, %s4
  $region1: #{gpt2_output_layer.1} parent=0
    #allocation2 [shape = 'u8[8192]{0}', space=vmem, size = 0x2000, scoped, tag = 'input window, operand 0, single buffered']
    #allocation3 [shape = 's32[1]{0}', space=sflag, size = 0x4, scoped, tag = 'scoped memory for gpt2_output_layer.1']
    #allocation4 [shape = 's32[1]{0}', space=sflag, size = 0x4, scoped, tag = 'scoped memory for gpt2_output_layer.1']
    #allocation5 [shape = 'u8[8192]{0}', space=vmem, size = 0x2000, scoped, tag = 'output window, operand 0, single buffered']
    %8 = vsyncpa [#allocation3], 0
    %9 = vsyncpa [#allocation4], 0
    // Predicated region
    $region2: #{gpt2_output_layer.1} parent=1 // pred_check
      _
    $region3: #{gpt2_output_layer.1} parent=1 // pred_check_branch
      %11 = sbr.rel (0) target = $region5
    $region4: #{gpt2_output_layer.1} parent=1 // pred_region
      %s13 = ssub.s32 256, 256
      %14 = vsyncadd [#allocation3], %s13
      %s15 = sshll.u32 [#allocation2], 4
      %s16 = int_to_ptr.vmem [resolvable:$true] %s15
      %21 = dma.hbm_to_vmem [thread:$0]  %s0, 256, %s16, [#allocation3], 128, 128, 8
    $region5: #{gpt2_output_layer.1} parent=1 // pred_fallthru
      _
    // Predicated region
    $region6: #{gpt2_output_layer.1} parent=1 // pred_check
      _
    $region7: #{gpt2_output_layer.1} parent=1 // pred_check_branch
      %23 = sbr.rel (0) target = $region9
    $region8: #{gpt2_output_layer.1} parent=1 // pred_region
      _
    $region9: #{gpt2_output_layer.1} parent=1 // pred_fallthru
      _
    // Predicated region
    $region10: #{gpt2_output_layer.1} parent=1 // pred_check
      _
    $region11: #{gpt2_output_layer.1} parent=1 // pred_check_branch
      %25 = sbr.rel (0) target = $region13
    $region12: #{gpt2_output_layer.1} parent=1 // pred_region
      _
    $region13: #{gpt2_output_layer.1} parent=1 // pred_fallthru
      _
    // Predicated region
    $region14: #{gpt2_output_layer.1} parent=1 // pred_check
      _
    $region15: #{gpt2_output_layer.1} parent=1 // pred_check_branch
      %27 = sbr.rel (0) target = $region17
    $region16: #{gpt2_output_layer.1} parent=1 // pred_region
      %28 = dma.done [#allocation3], 256
    $region17: #{gpt2_output_layer.1} parent=1 // pred_fallthru
      _
    %v29 = vld [vmem:[#allocation2] sm:$0xff]
    %v30 = vld [vmem:[#allocation2 + $0x8] sm:$0xff]
    %vm31 = vcmask 261120
    %v32 = vsel %vm31, %v29, 0.0
    %33 = vadd.xlane.f32.xlu0 %v32
    %v34 = vpop.xlane.xlu0 %33
    %v35 = vsel %vm31, %v30, 0.0
    %36 = vadd.xlane.f32.xlu0 %v35
    %v37 = vpop.xlane.xlu0 %36
    %v38 = vrcp.pop 32.0
    %v39 = vmul.f32 %v34, %v38
    %v40 = vmul.f32 %v37, %v38
    %v41 = vsub.f32 %v29, %v39
    %v42 = vsub.f32 %v30, %v40
    %v43 = vmul.f32 %v41, %v41
    %v44 = vmul.f32 %v42, %v42
    %v45 = vsel %vm31, %v43, 0.0
    %46 = vadd.xlane.f32.xlu0 %v45
    %v47 = vpop.xlane.xlu0 %46
    %v48 = vsel %vm31, %v44, 0.0
    %49 = vadd.xlane.f32.xlu0 %v48
    %v50 = vpop.xlane.xlu0 %49
    %v51 = vmul.f32 %v47, %v38
    %v52 = vmul.f32 %v50, %v38
    %v53 = vadd.f32 %v51, 1e-05
    %v54 = vadd.f32 %v52, 1e-05
    %v55 = vrsqrt.pop %v53
    %v56 = vrsqrt.pop %v54
    %v57 = vld [vmem:[%s1] sm:$0x1]
    %v58 = vld [vmem:[%s2] sm:$0x1]
    %v59 = vmul.f32 %v41, %v55
    %v60 = vmul.f32 %v42, %v56
    %v62 = vlaneseq
    %v63 = vshrl.u32 %v62, 7
    %v64 = vsub.s32 0, %v63
    %v65 = vrot.slane %v57, %v64
    %v67 = vmul.f32 %v59, %v65
    %v68 = vmul.f32 %v60, %v65
    %v70 = vlaneseq
    %v71 = vshrl.u32 %v70, 7
    %v72 = vsub.s32 0, %v71
    %v73 = vrot.slane %v58, %v72
    %v75 = vadd.f32 %v67, %v73
    %v76 = vadd.f32 %v68, %v73
    %77 = vst.msk [vmem:[#allocation5] sm:$0xff] %vm31, %v75
    %78 = vst.msk [vmem:[#allocation5 + $0x8] sm:$0xff] %vm31, %v76
    // Predicated region
    $region18: #{gpt2_output_layer.1} parent=1 // pred_check
      _
    $region19: #{gpt2_output_layer.1} parent=1 // pred_check_branch
      %80 = sbr.rel (0) target = $region21
    $region20: #{gpt2_output_layer.1} parent=1 // pred_region
      %s82 = ssub.s32 256, 256
      %83 = vsyncadd [#allocation4], %s82
      %s84 = sshll.u32 [#allocation5], 4
      %s85 = int_to_ptr.vmem [resolvable:$true] %s84
      %90 = dma.vmem_to_hbm [thread:$0]  %s85, 256, %s3, [#allocation4], 128, 128, 8
    $region21: #{gpt2_output_layer.1} parent=1 // pred_fallthru
      _
    // Predicated region
    $region22: #{gpt2_output_layer.1} parent=1 // pred_check
      _
    $region23: #{gpt2_output_layer.1} parent=1 // pred_check_branch
      %92 = sbr.rel (0) target = $region25
    $region24: #{gpt2_output_layer.1} parent=1 // pred_region
      %93 = dma.done [#allocation4], 256
    $region25: #{gpt2_output_layer.1} parent=1 // pred_fallthru
      _
    %94 = vsyncpa [#allocation3], 1
    %95 = vsyncpa [#allocation4], 1

</llo_original>
